<compile_context>
chip_gen: v6e
topology: v6e:2x2x1
jax: 0.10.0
libtpu: 0.0.40
codegen_flags: <defaults>
</compile_context>

<pallas_src>
import jax
import jax.numpy as jnp
from jax.experimental import pallas as pl
from jax.experimental.pallas import tpu as pltpu


def _atan2_poly(y, x):
    """atan2(y, x) via an odd degree-11 minimax polynomial on [0,1] + quadrant fixup.

    ~1e-5 rad polynomial error; the divide is an EUP approx reciprocal
    (adds ~2e-4 rad), everything else runs on VPU mul/add/select.
    """
    ay = jnp.abs(y)
    ax = jnp.abs(x)
    hi = jnp.maximum(ay, ax)
    lo = jnp.minimum(ay, ax)
    # EUP reciprocal; the 1e-30 clamp keeps (0, 0) lanes (junk rows/lanes) finite.
    t = lo * pl.reciprocal(jnp.maximum(hi, jnp.float32(1e-30)), approx=True)
    t2 = t * t
    p = jnp.float32(-0.01172120)
    p = p * t2 + jnp.float32(0.05265332)
    p = p * t2 + jnp.float32(-0.11643287)
    p = p * t2 + jnp.float32(0.19354346)
    p = p * t2 + jnp.float32(-0.33262347)
    p = p * t2 + jnp.float32(0.99997726)
    r = p * t                                       # atan(min/max) in [0, pi/4]
    r = jnp.where(ay > ax, jnp.float32(jnp.pi / 2) - r, r)
    r = jnp.where(x < 0, jnp.float32(jnp.pi) - r, r)
    r = jnp.where(y < 0, -r, r)
    return r


def _round_up(v, m):
    return ((v + m - 1) // m) * m


def qiconv2d_forward(x, cnn_weight, bias_weight, *, stride=1, padding=1, tile_m=128):
    N, C, H, W = x.shape
    Cout, Cin, K, K2 = cnn_weight.shape
    assert Cin == C and K == K2
    OH = (H + 2 * padding - K) // stride + 1
    OW = (W + 2 * padding - K) // stride + 1
    C2 = 2 * C
    KC = K * K * C2                                   # true contraction depth (72 here)
    Kdim = _round_up(max(KC, 128), 128)               # padded contraction (128 = v5e MXU depth)
    HALF = 64 if Cout <= 64 else _round_up(Cout, 128) # real lanes [0:Cout], imag lanes [HALF:HALF+Cout]
    F2 = 2 * HALF                                     # single 128-lane output group when Cout<=64
    M_img = OH * OW
    M_pad = _round_up(M_img, tile_m)

    # ---- im2col slab (wrapper-side; ~K*K*2C*4 bytes per output position) ----
    # cos/sin BEFORE zero padding (padded taps must contribute 0, not cos(0)=1).
    # TODO(synk): for large images, compute cos/sin in-kernel from the raw image
    # (EUP is idle during the GEMM) to halve activation HBM traffic.
    xs = jnp.concatenate([jnp.cos(x), jnp.sin(x)], axis=1).astype(jnp.float32)   # (N, 2C, H, W)
    xs = jnp.pad(xs, ((0, 0), (0, 0), (padding, padding), (padding, padding)))
    xs = jnp.transpose(xs, (0, 2, 3, 1))                                         # (N, Hp, Wp, 2C)
    taps = []
    for ki in range(K):
        for kj in range(K):
            taps.append(xs[:, ki:ki + (OH - 1) * stride + 1:stride,
                              kj:kj + (OW - 1) * stride + 1:stride, :])
    xcol = jnp.concatenate(taps, axis=-1).reshape(N, M_img, KC)                  # (N, OH*OW, K*K*2C)
    xcol = jnp.pad(xcol, ((0, 0), (0, M_pad - M_img), (0, Kdim - KC)))

    # ---- fused complex weight: rows (ki, kj, [cos-ch | sin-ch]), cols [real | imag] ----
    wc = jnp.transpose(jnp.cos(cnn_weight), (2, 3, 1, 0)).astype(jnp.float32)    # (K, K, C, Cout)
    ws = jnp.transpose(jnp.sin(cnn_weight), (2, 3, 1, 0)).astype(jnp.float32)
    zp = jnp.zeros((K, K, C, HALF - Cout), jnp.float32)
    rows_cos = jnp.concatenate([wc, zp, ws, zp], axis=-1)                        # cos-feature rows
    rows_sin = jnp.concatenate([-ws, zp, wc, zp], axis=-1)                       # sin-feature rows
    w_fused = jnp.concatenate([rows_cos, rows_sin], axis=2).reshape(KC, F2)
    w_fused = jnp.pad(w_fused, ((0, Kdim - KC), (0, 0)))

    # Real biases cancel exactly; imag picks up 2*sin(b).  Stored in lanes [0:Cout]
    # because it is added AFTER the roll that aligns imag with the real lanes.
    b_fused = jnp.zeros((1, F2), jnp.float32)
    b_fused = b_fused.at[0, :Cout].set(2.0 * jnp.sin(bias_weight).astype(jnp.float32))

    def kernel(xcol_ref, w_ref, b_ref, o_ref):
        # xcol_ref: (tile_m, Kdim); w_ref: (Kdim, F2); b_ref: (1, F2); o_ref: (tile_m, F2)
        z = jnp.dot(xcol_ref[...], w_ref[...], preferred_element_type=jnp.float32)
        real = z                                              # lanes [0:Cout] valid
        imag = pltpu.roll(z, HALF, axis=1) + b_ref[...]       # imag_j now in lane j (j < Cout)
        o_ref[...] = (jnp.float32(jnp.pi / 2)
                      - _atan2_poly(imag, real)).astype(o_ref.dtype)

    cost = pl.CostEstimate(
        flops=2 * N * M_pad * Kdim * F2,
        transcendentals=N * M_pad * F2,
        bytes_accessed=4 * (xcol.size + w_fused.size + b_fused.size + N * M_pad * F2),
    )

    out = pl.pallas_call(
        kernel,
        out_shape=jax.ShapeDtypeStruct((N, M_pad, F2), jnp.float32),
        grid_spec=pltpu.PrefetchScalarGridSpec(
            num_scalar_prefetch=0,
            grid=(N, M_pad // tile_m),
            in_specs=[
                pl.BlockSpec((None, tile_m, Kdim), lambda n, m: (n, m, 0)),   # im2col rows
                pl.BlockSpec((Kdim, F2), lambda n, m: (0, 0)),                # fused weight
                pl.BlockSpec((1, F2), lambda n, m: (0, 0)),                   # fused imag bias
            ],
            out_specs=pl.BlockSpec((None, tile_m, F2), lambda n, m: (n, m, 0)),
        ),
        compiler_params=pltpu.CompilerParams(
            dimension_semantics=("parallel", "parallel")),
        cost_estimate=cost,
    )(xcol, w_fused, b_fused)

    # Drop row/lane padding; reshape to NCHW.
    y = out[:, :M_img, :Cout].reshape(N, OH, OW, Cout)
    return jnp.transpose(y, (0, 3, 1, 2))


def _reference(x, w, b, stride, padding):
    """Pure-JAX reference mirroring the PyTorch forward exactly."""
    cos_x, sin_x = jnp.cos(x), jnp.sin(x)
    ct, st = jnp.cos(w), jnp.sin(w)
    rb = jnp.cos(b)[None, :, None, None]
    ib = jnp.sin(b)[None, :, None, None]
    dn = ('NCHW', 'OIHW', 'NCHW')
    conv = lambda a, k: jax.lax.conv_general_dilated(
        a, k, (stride, stride),
        [(padding, padding), (padding, padding)], dimension_numbers=dn)
    real = (conv(cos_x, ct) + rb) - (conv(sin_x, st) + rb)
    imag = (conv(sin_x, ct) + ib) + (conv(cos_x, st) + ib)
    return jnp.pi / 2 - jnp.arctan2(imag, real)


if __name__ == "__main__":
    key = jax.random.PRNGKey(0)
    kx, kw, kb = jax.random.split(key, 3)

    N, Cin, H, W = 2, 4, 16, 16
    Cout, K = 8, 3
    stride, padding = 1, 1

    x = jax.random.normal(kx, (N, Cin, H, W), jnp.float32)
    # Deterministic parameter init matching torch.rand (uniform [0, 1)).
    cnn_weight = jax.random.uniform(kw, (Cout, Cin, K, K), jnp.float32)
    bias_weight = jax.random.uniform(kb, (Cout,), jnp.float32)

    fwd = jax.jit(qiconv2d_forward, static_argnames=("stride", "padding"))
    y = fwd(x, cnn_weight, bias_weight, stride=stride, padding=padding)
    y = jax.block_until_ready(y)

    y_ref = _reference(x, cnn_weight, bias_weight, stride, padding)
    assert y.shape == (N, Cout, H, W), y.shape
    max_err = float(jnp.max(jnp.abs(y - y_ref)))
    assert max_err < 2e-3, f"max abs err = {max_err}"
    print("KERNEL_OK")
</pallas_src>

<mosaic_0001>
module attributes {stable_mosaic.version = 11 : i64} {
  func.func @kernel(%arg0: i32, %arg1: i32, %arg2: memref<1x128x128xf32, #tpu.memory_space<vmem>>, %arg3: memref<128x128xf32, #tpu.memory_space<vmem>>, %arg4: memref<1x128xf32, #tpu.memory_space<vmem>>, %arg5: memref<1x128x128xf32, #tpu.memory_space<vmem>>) attributes {dimension_semantics = [#tpu.dimension_semantics<parallel>, #tpu.dimension_semantics<parallel>], iteration_bounds = array<i64: 2, 2>, scalar_prefetch = 0 : i64, scratch_operands = 0 : i64, tpu.core_type = #tpu.core_type<tc>, window_params = [{transform_indices = @transform_0, window_bounds = array<i64: 1, 128, 128>}, {pipeline_mode = #tpu.pipeline_mode<synchronous>, transform_indices = @transform_1, window_bounds = array<i64: 128, 128>}, {pipeline_mode = #tpu.pipeline_mode<synchronous>, transform_indices = @transform_2, window_bounds = array<i64: 1, 128>}, {transform_indices = @transform_3, window_bounds = array<i64: 1, 128, 128>}]} {
    %c0 = arith.constant 0 : index
    %c0_0 = arith.constant 0 : index
    %c0_1 = arith.constant 0 : index
    %0 = vector.load %arg2[%c0, %c0_0, %c0_1] : memref<1x128x128xf32, #tpu.memory_space<vmem>>, vector<1x128x128xf32>
    %1 = vector.shape_cast %0 : vector<1x128x128xf32> to vector<128x128xf32>
    %c0_2 = arith.constant 0 : index
    %c0_3 = arith.constant 0 : index
    %2 = vector.load %arg3[%c0_2, %c0_3] : memref<128x128xf32, #tpu.memory_space<vmem>>, vector<128x128xf32>
    %cst = arith.constant dense<0.000000e+00> : vector<128x128xf32>
    %3 = tpu.matmul %1, %2, %cst {dimension_numbers = #tpu.dot_dimension_numbers<[1], [0], [0], [1], [0, 0, 1, 1], [], []>} : vector<128x128xf32>, vector<128x128xf32>, vector<128x128xf32> -> vector<128x128xf32>
    %c64_i32 = arith.constant 64 : i32
    %4 = tpu.dynamic_rotate %3 by %c64_i32 dim 1 : vector<128x128xf32>, i32 -> vector<128x128xf32>
    %c0_4 = arith.constant 0 : index
    %c0_5 = arith.constant 0 : index
    %5 = vector.load %arg4[%c0_4, %c0_5] : memref<1x128xf32, #tpu.memory_space<vmem>>, vector<1x128xf32>
    %6 = vector.broadcast %5 : vector<1x128xf32> to vector<128x128xf32>
    %7 = arith.addf %4, %6 : vector<128x128xf32>
    %8 = math.absf %7 : vector<128x128xf32>
    %9 = math.absf %3 : vector<128x128xf32>
    %10 = arith.maximumf %8, %9 : vector<128x128xf32>
    %11 = arith.minimumf %8, %9 : vector<128x128xf32>
    %cst_6 = arith.constant 1.000000e-30 : f32
    %12 = vector.broadcast %cst_6 : f32 to vector<128x128xf32>
    %13 = arith.maximumf %10, %12 : vector<128x128xf32>
    %14 = tpu.reciprocal %13 {approx = true} : vector<128x128xf32> -> vector<128x128xf32>
    %15 = arith.mulf %11, %14 : vector<128x128xf32>
    %16 = arith.mulf %15, %15 : vector<128x128xf32>
    %cst_7 = arith.constant -1.172120e-02 : f32
    %17 = vector.broadcast %cst_7 : f32 to vector<128x128xf32>
    %18 = arith.mulf %17, %16 : vector<128x128xf32>
    %cst_8 = arith.constant 0.0526533201 : f32
    %19 = vector.broadcast %cst_8 : f32 to vector<128x128xf32>
    %20 = arith.addf %18, %19 : vector<128x128xf32>
    %21 = arith.mulf %20, %16 : vector<128x128xf32>
    %cst_9 = arith.constant -0.116432868 : f32
    %22 = vector.broadcast %cst_9 : f32 to vector<128x128xf32>
    %23 = arith.addf %21, %22 : vector<128x128xf32>
    %24 = arith.mulf %23, %16 : vector<128x128xf32>
    %cst_10 = arith.constant 0.193543464 : f32
    %25 = vector.broadcast %cst_10 : f32 to vector<128x128xf32>
    %26 = arith.addf %24, %25 : vector<128x128xf32>
    %27 = arith.mulf %26, %16 : vector<128x128xf32>
    %cst_11 = arith.constant -0.332623482 : f32
    %28 = vector.broadcast %cst_11 : f32 to vector<128x128xf32>
    %29 = arith.addf %27, %28 : vector<128x128xf32>
    %30 = arith.mulf %29, %16 : vector<128x128xf32>
    %cst_12 = arith.constant 0.999977231 : f32
    %31 = vector.broadcast %cst_12 : f32 to vector<128x128xf32>
    %32 = arith.addf %30, %31 : vector<128x128xf32>
    %33 = arith.mulf %32, %15 : vector<128x128xf32>
    %34 = arith.cmpf ogt, %8, %9 : vector<128x128xf32>
    %cst_13 = arith.constant 1.57079637 : f32
    %35 = vector.broadcast %cst_13 : f32 to vector<128x128xf32>
    %36 = arith.subf %35, %33 : vector<128x128xf32>
    %37 = arith.select %34, %36, %33 : vector<128x128xi1>, vector<128x128xf32>
    %cst_14 = arith.constant 0.000000e+00 : f32
    %38 = vector.broadcast %cst_14 : f32 to vector<128x128xf32>
    %39 = arith.cmpf olt, %3, %38 : vector<128x128xf32>
    %cst_15 = arith.constant 3.14159274 : f32
    %40 = vector.broadcast %cst_15 : f32 to vector<128x128xf32>
    %41 = arith.subf %40, %37 : vector<128x128xf32>
    %42 = arith.select %39, %41, %37 : vector<128x128xi1>, vector<128x128xf32>
    %cst_16 = arith.constant 0.000000e+00 : f32
    %43 = vector.broadcast %cst_16 : f32 to vector<128x128xf32>
    %44 = arith.cmpf olt, %7, %43 : vector<128x128xf32>
    %cst_17 = arith.constant 0.000000e+00 : f32
    %45 = vector.broadcast %cst_17 : f32 to vector<128x128xf32>
    %46 = arith.subf %45, %42 : vector<128x128xf32>
    %47 = arith.select %44, %46, %42 : vector<128x128xi1>, vector<128x128xf32>
    %cst_18 = arith.constant 1.57079637 : f32
    %48 = vector.broadcast %cst_18 : f32 to vector<128x128xf32>
    %49 = arith.subf %48, %47 : vector<128x128xf32>
    %c0_19 = arith.constant 0 : index
    %c0_20 = arith.constant 0 : index
    %c0_21 = arith.constant 0 : index
    %50 = vector.load %arg5[%c0_19, %c0_20, %c0_21] : memref<1x128x128xf32, #tpu.memory_space<vmem>>, vector<1x128x128xf32>
    %51 = vector.shape_cast %50 : vector<1x128x128xf32> to vector<128x128xf32>
    %52 = vector.shape_cast %49 : vector<128x128xf32> to vector<1x128x128xf32>
    tpu.vector_store %arg5[%c0_19, %c0_20, %c0_21], %52 {strides = array<i32>} : memref<1x128x128xf32, #tpu.memory_space<vmem>>, vector<1x128x128xf32>,
    return
  }
  func.func @transform_0(%arg0: i32, %arg1: i32) -> (i32, i32, i32) {
    %c0_i32 = arith.constant 0 : i32
    %c0_i32_0 = arith.constant 0 : i32
    return %arg0, %arg1, %c0_i32 : i32, i32, i32
  }
  func.func @transform_1(%arg0: i32, %arg1: i32) -> (i32, i32) {
    %c0_i32 = arith.constant 0 : i32
    %c0_i32_0 = arith.constant 0 : i32
    %c0_i32_1 = arith.constant 0 : i32
    return %c0_i32, %c0_i32_0 : i32, i32
  }
  func.func @transform_2(%arg0: i32, %arg1: i32) -> (i32, i32) {
    %c0_i32 = arith.constant 0 : i32
    %c0_i32_0 = arith.constant 0 : i32
    %c0_i32_1 = arith.constant 0 : i32
    return %c0_i32, %c0_i32_0 : i32, i32
  }
  func.func @transform_3(%arg0: i32, %arg1: i32) -> (i32, i32, i32) {
    %c0_i32 = arith.constant 0 : i32
    %c0_i32_0 = arith.constant 0 : i32
    return %arg0, %arg1, %c0_i32 : i32, i32, i32
  }
}

</mosaic_0001>

<llo_original>
// kernel: qiconv2d_forward.1
$region0: #{qiconv2d_forward.1}
  #allocation0 [shape = 'u32[]', space=smem, size = 0x4, offset = 0x4, fixed_abs, tag = 'smem constant byte address 0x4 - core index']
  #allocation1 [shape = 'u32[144,128]{1,0:T(1,128)}', space=vmem, size = 0x12000, scoped, tag = 'internal scratch']
  %s0 = inlined_call_operand.vmem [shape: f32[2,256,128], index: 0, kind: input, shape index: {}]
  %s1 = inlined_call_operand.vmem [shape: f32[128,128], index: 1, kind: input, shape index: {}]
  %s2 = inlined_call_operand.vmem [shape: f32[1,128], index: 2, kind: input, shape index: {}]
  %s3 = inlined_call_operand.vmem [shape: f32[2,256,128], index: 3, kind: output, shape index: {}]
  %s4 = sld [smem:[#allocation0]]
  $region45: #{qiconv2d_forward.1} parent=0
    _
  %s6 = ssub.s32 1, %s4
  %s7 = scalar_select 0, %s6, %s4
  loop: start=0, step=1, limit=6
  $region2: #{qiconv2d_forward.1} parent=0 // loop_pre_header
    _
  $region3: #{qiconv2d_forward.1} parent=0 // loop_header
    %s9 = sphi 0, %s13
    %p10 = scmp.ge.s32.totalorder %s9, 6
    %s16 = sphi 0, %s28
    %s17 = sphi 0, %s24
    %s18 = sphi 0, %s16
    %s19 = sphi 0, %s17
    %s20 = sphi 0, %s18
    %s21 = sphi 0, %s19
    %s33 = sphi 0, %s35
    %s36 = sphi 0, %s33
    %s37 = sphi 0, %s36
    %s53 = sphi 0, %s37
    %s57 = sphi 0, %s57
    %s59 = sphi 0, %s57
    %s60 = sphi 0, %s59
    %s74 = sphi 0, %s60
    %s78 = sphi 0, %s78
    %s80 = sphi 0, %s78
    %s81 = sphi 0, %s80
    %s95 = sphi 0, %s81
    %s103 = sphi 0, %s105
    %s106 = sphi 0, %s103
    %s107 = sphi 0, %s106
    %s123 = sphi 0, %s107
  $region4: #{qiconv2d_forward.1} parent=0 // loop_header_branch
    %12 = sbr.rel (%p10) target = $region8
  $region5: #{qiconv2d_forward.1} parent=0 // loop_body
    %s14 = ssub.s32 %s9, 1
    %s15 = ssub.s32 %s9, 2
    %s22 = sadd.s32 1, %s17
    %p23 = scmp.ge.s32.totalorder %s22, 2
    %s24 = scalar_select %p23, 0, %s22
    %s25 = sadd.s32 1, %s16
    %s26 = scalar_select %p23, %s25, %s16
    %p27 = scmp.ge.s32.totalorder %s26, 2
    %s28 = scalar_select %p27, 0, %s26
    %s29 = ssub.s32 %s16, %s28
    %s30 = ssub.s32 %s17, %s24
    %s31 = sor.u32 %s29, %s30
    %p32 = scmp.eq.s32.totalorder %s31, 0
    %s34 = sadd.s32 %s33, 1
    %s35 = scalar_select %p32, %s33, %s34
    %p38 = pneg %p32
    %p39 = scmp.eq.s32.totalorder %s9, 3
    %p40 = por %p38, %p39
    %p41 = scmp.ne.s32.totalorder %s33, %s36
    %p42 = scmp.eq.s32.totalorder %s9, 0
    %p43 = por %p41, %p42
    %p44 = scmp.ne.s32.totalorder %s33, %s36
    %p45 = scmp.eq.s32.totalorder %s14, 3
    %p46 = por %p44, %p45
    %p47 = scmp.ne.s32.totalorder %s36, %s37
    %p48 = scmp.eq.s32.totalorder %s14, 0
    %p49 = por %p47, %p48
    %p50 = scmp.ne.s32.totalorder %s36, %s37
    %p51 = scmp.eq.s32.totalorder %s15, 3
    %p52 = por %p50, %p51
    %p54 = scmp.ne.s32.totalorder %s37, %s53
    %p55 = scmp.eq.s32.totalorder %s15, 0
    %p56 = por %p54, %p55
    %s58 = sadd.s32 %s57, 1
    %p61 = scmp.eq.s32.totalorder %s9, 3
    %p62 = scmp.ne.s32.totalorder %s57, %s59
    %p63 = scmp.eq.s32.totalorder %s9, 0
    %p64 = por %p62, %p63
    %p65 = scmp.ne.s32.totalorder %s57, %s59
    %p66 = scmp.eq.s32.totalorder %s14, 3
    %p67 = por %p65, %p66
    %p68 = scmp.ne.s32.totalorder %s59, %s60
    %p69 = scmp.eq.s32.totalorder %s14, 0
    %p70 = por %p68, %p69
    %p71 = scmp.ne.s32.totalorder %s59, %s60
    %p72 = scmp.eq.s32.totalorder %s15, 3
    %p73 = por %p71, %p72
    %p75 = scmp.ne.s32.totalorder %s60, %s74
    %p76 = scmp.eq.s32.totalorder %s15, 0
    %p77 = por %p75, %p76
    %s79 = sadd.s32 %s78, 1
    %p82 = scmp.eq.s32.totalorder %s9, 3
    %p83 = scmp.ne.s32.totalorder %s78, %s80
    %p84 = scmp.eq.s32.totalorder %s9, 0
    %p85 = por %p83, %p84
    %p86 = scmp.ne.s32.totalorder %s78, %s80
    %p87 = scmp.eq.s32.totalorder %s14, 3
    %p88 = por %p86, %p87
    %p89 = scmp.ne.s32.totalorder %s80, %s81
    %p90 = scmp.eq.s32.totalorder %s14, 0
    %p91 = por %p89, %p90
    %p92 = scmp.ne.s32.totalorder %s80, %s81
    %p93 = scmp.eq.s32.totalorder %s15, 3
    %p94 = por %p92, %p93
    %p96 = scmp.ne.s32.totalorder %s81, %s95
    %p97 = scmp.eq.s32.totalorder %s15, 0
    %p98 = por %p96, %p97
    %s99 = ssub.s32 %s16, %s28
    %s100 = ssub.s32 %s17, %s24
    %s101 = sor.u32 %s99, %s100
    %p102 = scmp.eq.s32.totalorder %s101, 0
    %s104 = sadd.s32 %s103, 1
    %s105 = scalar_select %p102, %s103, %s104
    %p108 = pneg %p102
    %p109 = scmp.eq.s32.totalorder %s9, 3
    %p110 = por %p108, %p109
    %p111 = scmp.ne.s32.totalorder %s103, %s106
    %p112 = scmp.eq.s32.totalorder %s9, 0
    %p113 = por %p111, %p112
    %p114 = scmp.ne.s32.totalorder %s103, %s106
    %p115 = scmp.eq.s32.totalorder %s14, 3
    %p116 = por %p114, %p115
    %p117 = scmp.ne.s32.totalorder %s106, %s107
    %p118 = scmp.eq.s32.totalorder %s14, 0
    %p119 = por %p117, %p118
    %p120 = scmp.ne.s32.totalorder %s106, %s107
    %p121 = scmp.eq.s32.totalorder %s15, 3
    %p122 = por %p120, %p121
    %p124 = scmp.ne.s32.totalorder %s107, %s123
    %p125 = scmp.eq.s32.totalorder %s15, 0
    %p126 = por %p124, %p125
    %p127 = scmp.le.s32.totalorder 1, %s9
    %p128 = scmp.lt.s32.totalorder %s9, 5
    %p129 = pnand %p127, %p128
    %p130 = pneg %p129
    // Predicated region
    $region9: #{qiconv2d_forward.1} parent=5 // pred_check
      _
    $region10: #{qiconv2d_forward.1} parent=5 // pred_check_branch
      %132 = sbr.rel (%p129) target = $region12
    $region11: #{qiconv2d_forward.1} parent=5 // pred_region
      %s133 = ssub.s32 %s9, 1
      // Predicated region
      $region13: #{qiconv2d_forward.1} parent=11 // pred_check
        %p134 = pneg %p70
      $region14: #{qiconv2d_forward.1} parent=11 // pred_check_branch
        %136 = sbr.rel (%p134) target = $region16
      $region15: #{qiconv2d_forward.1} parent=11 // pred_region
        _
      $region16: #{qiconv2d_forward.1} parent=11 // pred_fallthru
        _
      // Predicated region
      $region17: #{qiconv2d_forward.1} parent=11 // pred_check
        %p137 = pneg %p91
      $region18: #{qiconv2d_forward.1} parent=11 // pred_check_branch
        %139 = sbr.rel (%p137) target = $region20
      $region19: #{qiconv2d_forward.1} parent=11 // pred_region
        _
      $region20: #{qiconv2d_forward.1} parent=11 // pred_fallthru
        _
    $region12: #{qiconv2d_forward.1} parent=5 // pred_fallthru
      _
    %p140 = scmp.lt.s32.totalorder %s9, 4
    // Predicated region
    $region21: #{qiconv2d_forward.1} parent=5 // pred_check
      %p141 = pneg %p140
    $region22: #{qiconv2d_forward.1} parent=5 // pred_check_branch
      %143 = sbr.rel (%p141) target = $region24
    $region23: #{qiconv2d_forward.1} parent=5 // pred_region
      // Predicated region
      $region25: #{qiconv2d_forward.1} parent=23 // pred_check
        %p144 = pneg %p43
      $region26: #{qiconv2d_forward.1} parent=23 // pred_check_branch
        %146 = sbr.rel (%p144) target = $region28
      $region27: #{qiconv2d_forward.1} parent=23 // pred_region
        %s147 = smul.u32 16, %s17
        %p148 = scmp.lt.s32.totalorder %s16, 1
        %s149 = scalar_select %p148, %s16, 1
        %p150 = scmp.lt.s32.totalorder %s147, 31
        %s151 = scalar_select %p150, %s147, 31
        %s152 = smul.addr %s149, 32
        %s153 = sadd.s32 %s151, %s152
        %s154 = smul.addr %s153, 8
        %s155 = scalar_lea.vmem %s0, %s154
        %s156 = smul.u32 16, %s17
      $region28: #{qiconv2d_forward.1} parent=23 // pred_fallthru
        _
    $region24: #{qiconv2d_forward.1} parent=5 // pred_fallthru
      _
    %p157 = scmp.le.s32.totalorder 1, %s9
    %p158 = scmp.lt.s32.totalorder %s9, 5
    %p159 = pnand %p157, %p158
    %p160 = pneg %p159
    // Predicated region
    $region29: #{qiconv2d_forward.1} parent=5 // pred_check
      _
    $region30: #{qiconv2d_forward.1} parent=5 // pred_check_branch
      %162 = sbr.rel (%p159) target = $region32
    $region31: #{qiconv2d_forward.1} parent=5 // pred_region
      %s163 = ssub.s32 %s9, 1
      %s164 = smul.u32 16, %s19
      %p165 = scmp.lt.s32.totalorder %s18, 1
      %s166 = scalar_select %p165, %s18, 1
      %p167 = scmp.lt.s32.totalorder %s164, 31
      %s168 = scalar_select %p167, %s164, 31
      %s169 = smul.addr %s166, 32
      %s170 = sadd.s32 %s168, %s169
      %s171 = smul.addr %s170, 8
      %s172 = scalar_lea.vmem %s0, %s171
      %p173 = pneg %p49
      %p174 = pneg %p46
      %p175 = pneg %p70
      %p176 = pneg %p67
      %p177 = pneg %p91
      %p178 = pneg %p88
      %p179 = pneg %p119
      %p180 = pneg %p116
      %s181 = smul.u32 16, %s19
      %p182 = scmp.lt.s32.totalorder %s18, 1
      %s183 = scalar_select %p182, %s18, 1
      %p184 = scmp.lt.s32.totalorder %s181, 31
      %s185 = scalar_select %p184, %s181, 31
      %s186 = smul.addr %s183, 32
      %s187 = sadd.s32 %s185, %s186
      %s188 = smul.addr %s187, 8
      %s189 = scalar_lea.vmem %s3, %s188
      %s190 = smul.u32 16, %s19
      %p191 = scmp.lt.s32.totalorder %s18, 1
      %s192 = scalar_select %p191, %s18, 1
      %p193 = scmp.lt.s32.totalorder %s190, 31
      %s194 = scalar_select %p193, %s190, 31
      %s195 = smul.addr %s192, 32
      %s196 = sadd.s32 %s194, %s195
      %s197 = smul.addr %s196, 8
      %s198 = scalar_lea.vmem %s0, %s197
      %s199 = smul.u32 16, %s19
      %s200 = smul.u32 16, %s19
      %p201 = scmp.lt.s32.totalorder %s18, 1
      %s202 = scalar_select %p201, %s18, 1
      %p203 = scmp.lt.s32.totalorder %s200, 31
      %s204 = scalar_select %p203, %s200, 31
      %s205 = smul.addr %s202, 32
      %s206 = sadd.s32 %s204, %s205
      %s207 = smul.addr %s206, 8
      %s208 = scalar_lea.vmem %s3, %s207
      %s209 = smul.u32 16, %s19
      %v210 = vld [vmem:[%s198] sm:$0xff]
      %v211 = vld [vmem:[%s198 + $0x8] sm:$0xff]
      %v212 = vld [vmem:[%s198 + $0x10] sm:$0xff]
      %v213 = vld [vmem:[%s198 + $0x18] sm:$0xff]
      %v214 = vld [vmem:[%s198 + $0x20] sm:$0xff]
      %v215 = vld [vmem:[%s198 + $0x28] sm:$0xff]
      %v216 = vld [vmem:[%s198 + $0x30] sm:$0xff]
      %v217 = vld [vmem:[%s198 + $0x38] sm:$0xff]
      %v218 = vld [vmem:[%s198 + $0x40] sm:$0xff]
      %v219 = vld [vmem:[%s198 + $0x48] sm:$0xff]
      %v220 = vld [vmem:[%s198 + $0x50] sm:$0xff]
      %v221 = vld [vmem:[%s198 + $0x58] sm:$0xff]
      %v222 = vld [vmem:[%s198 + $0x60] sm:$0xff]
      %v223 = vld [vmem:[%s198 + $0x68] sm:$0xff]
      %v224 = vld [vmem:[%s198 + $0x70] sm:$0xff]
      %v225 = vld [vmem:[%s198 + $0x78] sm:$0xff]
      %v226 = vld [vmem:[%s1] sm:$0xff]
      %v227 = vld [vmem:[%s1 + $0x8] sm:$0xff]
      %v228 = vld [vmem:[%s1 + $0x10] sm:$0xff]
      %v229 = vld [vmem:[%s1 + $0x18] sm:$0xff]
      %v230 = vld [vmem:[%s1 + $0x20] sm:$0xff]
      %v231 = vld [vmem:[%s1 + $0x28] sm:$0xff]
      %v232 = vld [vmem:[%s1 + $0x30] sm:$0xff]
      %v233 = vld [vmem:[%s1 + $0x38] sm:$0xff]
      %v234 = vld [vmem:[%s1 + $0x40] sm:$0xff]
      %v235 = vld [vmem:[%s1 + $0x48] sm:$0xff]
      %v236 = vld [vmem:[%s1 + $0x50] sm:$0xff]
      %v237 = vld [vmem:[%s1 + $0x58] sm:$0xff]
      %v238 = vld [vmem:[%s1 + $0x60] sm:$0xff]
      %v239 = vld [vmem:[%s1 + $0x68] sm:$0xff]
      %v240 = vld [vmem:[%s1 + $0x70] sm:$0xff]
      %v241 = vld [vmem:[%s1 + $0x78] sm:$0xff]
      %242 = vmatprep.subr.mxu0 0.0
      %243 = vmatpush1.msra.mxu0 %v241
      %244 = vmatprep.subr.mxu0 0.0
      %245 = vmatpush1.msra.mxu0 %v240
      %246 = vmatprep.subr.mxu0 0.0
      %247 = vmatpush1.msra.mxu0 %v239
      %248 = vmatprep.subr.mxu0 0.0
      %249 = vmatpush1.msra.mxu0 %v238
      %250 = vmatprep.subr.mxu0 0.0
      %251 = vmatpush1.msra.mxu0 %v237
      %252 = vmatprep.subr.mxu0 0.0
      %253 = vmatpush1.msra.mxu0 %v236
      %254 = vmatprep.subr.mxu0 0.0
      %255 = vmatpush1.msra.mxu0 %v235
      %256 = vmatprep.subr.mxu0 0.0
      %257 = vmatpush1.msra.mxu0 %v234
      %258 = vmatprep.subr.mxu0 0.0
      %259 = vmatpush1.msra.mxu0 %v233
      %260 = vmatprep.subr.mxu0 0.0
      %261 = vmatpush1.msra.mxu0 %v232
      %262 = vmatprep.subr.mxu0 0.0
      %263 = vmatpush1.msra.mxu0 %v231
      %264 = vmatprep.subr.mxu0 0.0
      %265 = vmatpush1.msra.mxu0 %v230
      %266 = vmatprep.subr.mxu0 0.0
      %267 = vmatpush1.msra.mxu0 %v229
      %268 = vmatprep.subr.mxu0 0.0
      %269 = vmatpush1.msra.mxu0 %v228
      %270 = vmatprep.subr.mxu0 0.0
      %271 = vmatpush1.msra.mxu0 %v227
      %272 = vmatprep.subr.mxu0 0.0
      %273 = vmatpush1.msra.mxu0 %v226
      %274 = vmatprep.subr.mxu0 0.0
      %275 = vmatpush2.msra.mxu0 0.0
      %276 = vmatprep.subr.mxu0 0.0
      %277 = vmatpush2.msra.mxu0 0.0
      %278 = vmatprep.subr.mxu0 0.0
      %279 = vmatpush2.msra.mxu0 0.0
      %280 = vmatprep.subr.mxu0 0.0
      %281 = vmatpush2.msra.mxu0 0.0
      %282 = vmatprep.subr.mxu0 0.0
      %283 = vmatpush2.msra.mxu0 0.0
      %284 = vmatprep.subr.mxu0 0.0
      %285 = vmatpush2.msra.mxu0 0.0
      %286 = vmatprep.subr.mxu0 0.0
      %287 = vmatpush2.msra.mxu0 0.0
      %288 = vmatprep.subr.mxu0 0.0
      %289 = vmatpush2.msra.mxu0 0.0
      %290 = vmatprep.subr.mxu0 0.0
      %291 = vmatpush2.msra.mxu0 0.0
      %292 = vmatprep.subr.mxu0 0.0
      %293 = vmatpush2.msra.mxu0 0.0
      %294 = vmatprep.subr.mxu0 0.0
      %295 = vmatpush2.msra.mxu0 0.0
      %296 = vmatprep.subr.mxu0 0.0
      %297 = vmatpush2.msra.mxu0 0.0
      %298 = vmatprep.subr.mxu0 0.0
      %299 = vmatpush2.msra.mxu0 0.0
      %300 = vmatprep.subr.mxu0 0.0
      %301 = vmatpush2.msra.mxu0 0.0
      %302 = vmatprep.subr.mxu0 0.0
      %303 = vmatpush2.msra.mxu0 0.0
      %304 = vmatprep.subr.mxu0 0.0
      %305 = vmatpush2.msra.mxu0 0.0
      %306 = vmatprep.mubr.f32.mxu0 0.0
      %307 = vmatmul.mubr.f32.gmra.mxu0 %v210
      %v308 = vpop.f32.mrf.mxu0
      %v309 = vadd.f32 0.0, %v308
      %v310 = vpop.f32.mrf.mxu0
      %311 = vmatprep.mubr.f32.mxu0 0.0
      %312 = vmatmul.mubr.f32.gmra.mxu0 %v211
      %v313 = vpop.f32.mrf.mxu0
      %v314 = vadd.f32 0.0, %v313
      %v315 = vpop.f32.mrf.mxu0
      %316 = vmatprep.mubr.f32.mxu0 0.0
      %317 = vmatmul.mubr.f32.gmra.mxu0 %v212
      %v318 = vpop.f32.mrf.mxu0
      %v319 = vadd.f32 0.0, %v318
      %v320 = vpop.f32.mrf.mxu0
      %321 = vmatprep.mubr.f32.mxu0 0.0
      %322 = vmatmul.mubr.f32.gmra.mxu0 %v213
      %v323 = vpop.f32.mrf.mxu0
      %v324 = vadd.f32 0.0, %v323
      %v325 = vpop.f32.mrf.mxu0
      %326 = vmatprep.mubr.f32.mxu0 0.0
      %327 = vmatmul.mubr.f32.gmra.mxu0 %v214
      %v328 = vpop.f32.mrf.mxu0
      %v329 = vadd.f32 0.0, %v328
      %v330 = vpop.f32.mrf.mxu0
      %331 = vmatprep.mubr.f32.mxu0 0.0
      %332 = vmatmul.mubr.f32.gmra.mxu0 %v215
      %v333 = vpop.f32.mrf.mxu0
      %v334 = vadd.f32 0.0, %v333
      %v335 = vpop.f32.mrf.mxu0
      %336 = vmatprep.mubr.f32.mxu0 0.0
      %337 = vmatmul.mubr.f32.gmra.mxu0 %v216
      %v338 = vpop.f32.mrf.mxu0
      %v339 = vadd.f32 0.0, %v338
      %v340 = vpop.f32.mrf.mxu0
      %341 = vmatprep.mubr.f32.mxu0 0.0
      %342 = vmatmul.mubr.f32.gmra.mxu0 %v217
      %v343 = vpop.f32.mrf.mxu0
      %v344 = vadd.f32 0.0, %v343
      %v345 = vpop.f32.mrf.mxu0
      %346 = vmatprep.mubr.f32.mxu0 0.0
      %347 = vmatmul.mubr.f32.gmra.mxu0 %v218
      %v348 = vpop.f32.mrf.mxu0
      %v349 = vadd.f32 0.0, %v348
      %v350 = vpop.f32.mrf.mxu0
      %351 = vmatprep.mubr.f32.mxu0 0.0
      %352 = vmatmul.mubr.f32.gmra.mxu0 %v219
      %v353 = vpop.f32.mrf.mxu0
      %v354 = vadd.f32 0.0, %v353
      %v355 = vpop.f32.mrf.mxu0
      %356 = vmatprep.mubr.f32.mxu0 0.0
      %357 = vmatmul.mubr.f32.gmra.mxu0 %v220
      %v358 = vpop.f32.mrf.mxu0
      %v359 = vadd.f32 0.0, %v358
      %v360 = vpop.f32.mrf.mxu0
      %361 = vmatprep.mubr.f32.mxu0 0.0
      %362 = vmatmul.mubr.f32.gmra.mxu0 %v221
      %v363 = vpop.f32.mrf.mxu0
      %v364 = vadd.f32 0.0, %v363
      %v365 = vpop.f32.mrf.mxu0
      %366 = vmatprep.mubr.f32.mxu0 0.0
      %367 = vmatmul.mubr.f32.gmra.mxu0 %v222
      %v368 = vpop.f32.mrf.mxu0
      %v369 = vadd.f32 0.0, %v368
      %v370 = vpop.f32.mrf.mxu0
      %371 = vmatprep.mubr.f32.mxu0 0.0
      %372 = vmatmul.mubr.f32.gmra.mxu0 %v223
      %v373 = vpop.f32.mrf.mxu0
      %v374 = vadd.f32 0.0, %v373
      %v375 = vpop.f32.mrf.mxu0
      %376 = vmatprep.mubr.f32.mxu0 0.0
      %377 = vmatmul.mubr.f32.gmra.mxu0 %v224
      %v378 = vpop.f32.mrf.mxu0
      %v379 = vadd.f32 0.0, %v378
      %v380 = vpop.f32.mrf.mxu0
      %381 = vmatprep.mubr.f32.mxu0 0.0
      %382 = vmatmul.mubr.f32.gmra.mxu0 %v225
      %v383 = vpop.f32.mrf.mxu0
      %v384 = vadd.f32 0.0, %v383
      %v385 = vpop.f32.mrf.mxu0
      %386 = vdwg.mxu0
      %387 = vrot.lane.b32.xlu0 %v309, 64
      %v388 = vpop.permute.xlu0 %387
      %389 = vrot.lane.b32.xlu0 %v314, 64
      %v390 = vpop.permute.xlu0 %389
      %391 = vrot.lane.b32.xlu0 %v319, 64
      %v392 = vpop.permute.xlu0 %391
      %393 = vrot.lane.b32.xlu0 %v324, 64
      %v394 = vpop.permute.xlu0 %393
      %395 = vrot.lane.b32.xlu0 %v329, 64
      %v396 = vpop.permute.xlu0 %395
      %397 = vrot.lane.b32.xlu0 %v334, 64
      %v398 = vpop.permute.xlu0 %397
      %399 = vrot.lane.b32.xlu0 %v339, 64
      %v400 = vpop.permute.xlu0 %399
      %401 = vrot.lane.b32.xlu0 %v344, 64
      %v402 = vpop.permute.xlu0 %401
      %403 = vrot.lane.b32.xlu0 %v349, 64
      %v404 = vpop.permute.xlu0 %403
      %405 = vrot.lane.b32.xlu0 %v354, 64
      %v406 = vpop.permute.xlu0 %405
      %407 = vrot.lane.b32.xlu0 %v359, 64
      %v408 = vpop.permute.xlu0 %407
      %409 = vrot.lane.b32.xlu0 %v364, 64
      %v410 = vpop.permute.xlu0 %409
      %411 = vrot.lane.b32.xlu0 %v369, 64
      %v412 = vpop.permute.xlu0 %411
      %413 = vrot.lane.b32.xlu0 %v374, 64
      %v414 = vpop.permute.xlu0 %413
      %415 = vrot.lane.b32.xlu0 %v379, 64
      %v416 = vpop.permute.xlu0 %415
      %417 = vrot.lane.b32.xlu0 %v384, 64
      %v418 = vpop.permute.xlu0 %417
      %v419 = vld [vmem:[%s2] sm:$0x1]
      %v421 = vlaneseq
      %v422 = vshrl.u32 %v421, 7
      %v423 = vsub.s32 0, %v422
      %v424 = vrot.slane %v419, %v423
      %v426 = vadd.f32 %v388, %v424
      %v427 = vadd.f32 %v390, %v424
      %v428 = vadd.f32 %v392, %v424
      %v429 = vadd.f32 %v394, %v424
      %v430 = vadd.f32 %v396, %v424
      %v431 = vadd.f32 %v398, %v424
      %v432 = vadd.f32 %v400, %v424
      %v433 = vadd.f32 %v402, %v424
      %v434 = vadd.f32 %v404, %v424
      %v435 = vadd.f32 %v406, %v424
      %v436 = vadd.f32 %v408, %v424
      %v437 = vadd.f32 %v410, %v424
      %v438 = vadd.f32 %v412, %v424
      %v439 = vadd.f32 %v414, %v424
      %v440 = vadd.f32 %v416, %v424
      %v441 = vadd.f32 %v418, %v424
      %v442 = vand.u32 2147483647, %v426
      %v443 = vand.u32 2147483647, %v427
      %v444 = vand.u32 2147483647, %v428
      %v445 = vand.u32 2147483647, %v429
      %v446 = vand.u32 2147483647, %v430
      %v447 = vand.u32 2147483647, %v431
      %v448 = vand.u32 2147483647, %v432
      %v449 = vand.u32 2147483647, %v433
      %v450 = vand.u32 2147483647, %v434
      %v451 = vand.u32 2147483647, %v435
      %v452 = vand.u32 2147483647, %v436
      %v453 = vand.u32 2147483647, %v437
      %v454 = vand.u32 2147483647, %v438
      %v455 = vand.u32 2147483647, %v439
      %v456 = vand.u32 2147483647, %v440
      %v457 = vand.u32 2147483647, %v441
      %v458 = vand.u32 2147483647, %v309
      %v459 = vand.u32 2147483647, %v314
      %v460 = vand.u32 2147483647, %v319
      %v461 = vand.u32 2147483647, %v324
      %v462 = vand.u32 2147483647, %v329
      %v463 = vand.u32 2147483647, %v334
      %v464 = vand.u32 2147483647, %v339
      %v465 = vand.u32 2147483647, %v344
      %v466 = vand.u32 2147483647, %v349
      %v467 = vand.u32 2147483647, %v354
      %v468 = vand.u32 2147483647, %v359
      %v469 = vand.u32 2147483647, %v364
      %v470 = vand.u32 2147483647, %v369
      %v471 = vand.u32 2147483647, %v374
      %v472 = vand.u32 2147483647, %v379
      %v473 = vand.u32 2147483647, %v384
      %v474 = vmax.f32 %v442, %v458
      %v475 = vmax.f32 %v443, %v459
      %v476 = vmax.f32 %v444, %v460
      %v477 = vmax.f32 %v445, %v461
      %v478 = vmax.f32 %v446, %v462
      %v479 = vmax.f32 %v447, %v463
      %v480 = vmax.f32 %v448, %v464
      %v481 = vmax.f32 %v449, %v465
      %v482 = vmax.f32 %v450, %v466
      %v483 = vmax.f32 %v451, %v467
      %v484 = vmax.f32 %v452, %v468
      %v485 = vmax.f32 %v453, %v469
      %v486 = vmax.f32 %v454, %v470
      %v487 = vmax.f32 %v455, %v471
      %v488 = vmax.f32 %v456, %v472
      %v489 = vmax.f32 %v457, %v473
      %v490 = vmin.f32 %v442, %v458
      %v491 = vmin.f32 %v443, %v459
      %v492 = vmin.f32 %v444, %v460
      %v493 = vmin.f32 %v445, %v461
      %v494 = vmin.f32 %v446, %v462
      %v495 = vmin.f32 %v447, %v463
      %v496 = vmin.f32 %v448, %v464
      %v497 = vmin.f32 %v449, %v465
      %v498 = vmin.f32 %v450, %v466
      %v499 = vmin.f32 %v451, %v467
      %v500 = vmin.f32 %v452, %v468
      %v501 = vmin.f32 %v453, %v469
      %v502 = vmin.f32 %v454, %v470
      %v503 = vmin.f32 %v455, %v471
      %v504 = vmin.f32 %v456, %v472
      %v505 = vmin.f32 %v457, %v473
      %v506 = vmax.f32 %v474, 1e-30
      %v507 = vmax.f32 %v475, 1e-30
      %v508 = vmax.f32 %v476, 1e-30
      %v509 = vmax.f32 %v477, 1e-30
      %v510 = vmax.f32 %v478, 1e-30
      %v511 = vmax.f32 %v479, 1e-30
      %v512 = vmax.f32 %v480, 1e-30
      %v513 = vmax.f32 %v481, 1e-30
      %v514 = vmax.f32 %v482, 1e-30
      %v515 = vmax.f32 %v483, 1e-30
      %v516 = vmax.f32 %v484, 1e-30
      %v517 = vmax.f32 %v485, 1e-30
      %v518 = vmax.f32 %v486, 1e-30
      %v519 = vmax.f32 %v487, 1e-30
      %v520 = vmax.f32 %v488, 1e-30
      %v521 = vmax.f32 %v489, 1e-30
      %v522 = vrcp.pop %v506
      %v523 = vrcp.pop %v507
      %v524 = vrcp.pop %v508
      %v525 = vrcp.pop %v509
      %v526 = vrcp.pop %v510
      %v527 = vrcp.pop %v511
      %v528 = vrcp.pop %v512
      %v529 = vrcp.pop %v513
      %v530 = vrcp.pop %v514
      %v531 = vrcp.pop %v515
      %v532 = vrcp.pop %v516
      %v533 = vrcp.pop %v517
      %v534 = vrcp.pop %v518
      %v535 = vrcp.pop %v519
      %v536 = vrcp.pop %v520
      %v537 = vrcp.pop %v521
      %v538 = vmul.f32 %v490, %v522
      %v539 = vmul.f32 %v491, %v523
      %v540 = vmul.f32 %v492, %v524
      %v541 = vmul.f32 %v493, %v525
      %v542 = vmul.f32 %v494, %v526
      %v543 = vmul.f32 %v495, %v527
      %v544 = vmul.f32 %v496, %v528
      %v545 = vmul.f32 %v497, %v529
      %v546 = vmul.f32 %v498, %v530
      %v547 = vmul.f32 %v499, %v531
      %v548 = vmul.f32 %v500, %v532
      %v549 = vmul.f32 %v501, %v533
      %v550 = vmul.f32 %v502, %v534
      %v551 = vmul.f32 %v503, %v535
      %v552 = vmul.f32 %v504, %v536
      %v553 = vmul.f32 %v505, %v537
      %v554 = vmul.f32 %v538, %v538
      %v555 = vmul.f32 %v539, %v539
      %v556 = vmul.f32 %v540, %v540
      %v557 = vmul.f32 %v541, %v541
      %v558 = vmul.f32 %v542, %v542
      %v559 = vmul.f32 %v543, %v543
      %v560 = vmul.f32 %v544, %v544
      %v561 = vmul.f32 %v545, %v545
      %v562 = vmul.f32 %v546, %v546
      %v563 = vmul.f32 %v547, %v547
      %v564 = vmul.f32 %v548, %v548
      %v565 = vmul.f32 %v549, %v549
      %v566 = vmul.f32 %v550, %v550
      %v567 = vmul.f32 %v551, %v551
      %v568 = vmul.f32 %v552, %v552
      %v569 = vmul.f32 %v553, %v553
      %v570 = vmul.f32 %v554, -0.0117212
      %v571 = vmul.f32 %v555, -0.0117212
      %v572 = vmul.f32 %v556, -0.0117212
      %v573 = vmul.f32 %v557, -0.0117212
      %v574 = vmul.f32 %v558, -0.0117212
      %v575 = vmul.f32 %v559, -0.0117212
      %v576 = vmul.f32 %v560, -0.0117212
      %v577 = vmul.f32 %v561, -0.0117212
      %v578 = vmul.f32 %v562, -0.0117212
      %v579 = vmul.f32 %v563, -0.0117212
      %v580 = vmul.f32 %v564, -0.0117212
      %v581 = vmul.f32 %v565, -0.0117212
      %v582 = vmul.f32 %v566, -0.0117212
      %v583 = vmul.f32 %v567, -0.0117212
      %v584 = vmul.f32 %v568, -0.0117212
      %v585 = vmul.f32 %v569, -0.0117212
      %v586 = vadd.f32 %v570, 0.05265332
      %v587 = vadd.f32 %v571, 0.05265332
      %v588 = vadd.f32 %v572, 0.05265332
      %v589 = vadd.f32 %v573, 0.05265332
      %v590 = vadd.f32 %v574, 0.05265332
      %v591 = vadd.f32 %v575, 0.05265332
      %v592 = vadd.f32 %v576, 0.05265332
      %v593 = vadd.f32 %v577, 0.05265332
      %v594 = vadd.f32 %v578, 0.05265332
      %v595 = vadd.f32 %v579, 0.05265332
      %v596 = vadd.f32 %v580, 0.05265332
      %v597 = vadd.f32 %v581, 0.05265332
      %v598 = vadd.f32 %v582, 0.05265332
      %v599 = vadd.f32 %v583, 0.05265332
      %v600 = vadd.f32 %v584, 0.05265332
      %v601 = vadd.f32 %v585, 0.05265332
      %v602 = vmul.f32 %v586, %v554
      %v603 = vmul.f32 %v587, %v555
      %v604 = vmul.f32 %v588, %v556
      %v605 = vmul.f32 %v589, %v557
      %v606 = vmul.f32 %v590, %v558
      %v607 = vmul.f32 %v591, %v559
      %v608 = vmul.f32 %v592, %v560
      %v609 = vmul.f32 %v593, %v561
      %v610 = vmul.f32 %v594, %v562
      %v611 = vmul.f32 %v595, %v563
      %v612 = vmul.f32 %v596, %v564
      %v613 = vmul.f32 %v597, %v565
      %v614 = vmul.f32 %v598, %v566
      %v615 = vmul.f32 %v599, %v567
      %v616 = vmul.f32 %v600, %v568
      %v617 = vmul.f32 %v601, %v569
      %v618 = vadd.f32 %v602, -0.11643287
      %v619 = vadd.f32 %v603, -0.11643287
      %v620 = vadd.f32 %v604, -0.11643287
      %v621 = vadd.f32 %v605, -0.11643287
      %v622 = vadd.f32 %v606, -0.11643287
      %v623 = vadd.f32 %v607, -0.11643287
      %v624 = vadd.f32 %v608, -0.11643287
      %v625 = vadd.f32 %v609, -0.11643287
      %v626 = vadd.f32 %v610, -0.11643287
      %v627 = vadd.f32 %v611, -0.11643287
      %v628 = vadd.f32 %v612, -0.11643287
      %v629 = vadd.f32 %v613, -0.11643287
      %v630 = vadd.f32 %v614, -0.11643287
      %v631 = vadd.f32 %v615, -0.11643287
      %v632 = vadd.f32 %v616, -0.11643287
      %v633 = vadd.f32 %v617, -0.11643287
      %v634 = vmul.f32 %v618, %v554
      %v635 = vmul.f32 %v619, %v555
      %v636 = vmul.f32 %v620, %v556
      %v637 = vmul.f32 %v621, %v557
      %v638 = vmul.f32 %v622, %v558
      %v639 = vmul.f32 %v623, %v559
      %v640 = vmul.f32 %v624, %v560
      %v641 = vmul.f32 %v625, %v561
      %v642 = vmul.f32 %v626, %v562
      %v643 = vmul.f32 %v627, %v563
      %v644 = vmul.f32 %v628, %v564
      %v645 = vmul.f32 %v629, %v565
      %v646 = vmul.f32 %v630, %v566
      %v647 = vmul.f32 %v631, %v567
      %v648 = vmul.f32 %v632, %v568
      %v649 = vmul.f32 %v633, %v569
      %v650 = vadd.f32 %v634, 0.19354346
      %v651 = vadd.f32 %v635, 0.19354346
      %v652 = vadd.f32 %v636, 0.19354346
      %v653 = vadd.f32 %v637, 0.19354346
      %v654 = vadd.f32 %v638, 0.19354346
      %v655 = vadd.f32 %v639, 0.19354346
      %v656 = vadd.f32 %v640, 0.19354346
      %v657 = vadd.f32 %v641, 0.19354346
      %v658 = vadd.f32 %v642, 0.19354346
      %v659 = vadd.f32 %v643, 0.19354346
      %v660 = vadd.f32 %v644, 0.19354346
      %v661 = vadd.f32 %v645, 0.19354346
      %v662 = vadd.f32 %v646, 0.19354346
      %v663 = vadd.f32 %v647, 0.19354346
      %v664 = vadd.f32 %v648, 0.19354346
      %v665 = vadd.f32 %v649, 0.19354346
      %v666 = vmul.f32 %v650, %v554
      %v667 = vmul.f32 %v651, %v555
      %v668 = vmul.f32 %v652, %v556
      %v669 = vmul.f32 %v653, %v557
      %v670 = vmul.f32 %v654, %v558
      %v671 = vmul.f32 %v655, %v559
      %v672 = vmul.f32 %v656, %v560
      %v673 = vmul.f32 %v657, %v561
      %v674 = vmul.f32 %v658, %v562
      %v675 = vmul.f32 %v659, %v563
      %v676 = vmul.f32 %v660, %v564
      %v677 = vmul.f32 %v661, %v565
      %v678 = vmul.f32 %v662, %v566
      %v679 = vmul.f32 %v663, %v567
      %v680 = vmul.f32 %v664, %v568
      %v681 = vmul.f32 %v665, %v569
      %v682 = vadd.f32 %v666, -0.33262348
      %v683 = vadd.f32 %v667, -0.33262348
      %v684 = vadd.f32 %v668, -0.33262348
      %v685 = vadd.f32 %v669, -0.33262348
      %v686 = vadd.f32 %v670, -0.33262348
      %v687 = vadd.f32 %v671, -0.33262348
      %v688 = vadd.f32 %v672, -0.33262348
      %v689 = vadd.f32 %v673, -0.33262348
      %v690 = vadd.f32 %v674, -0.33262348
      %v691 = vadd.f32 %v675, -0.33262348
      %v692 = vadd.f32 %v676, -0.33262348
      %v693 = vadd.f32 %v677, -0.33262348
      %v694 = vadd.f32 %v678, -0.33262348
      %v695 = vadd.f32 %v679, -0.33262348
      %v696 = vadd.f32 %v680, -0.33262348
      %v697 = vadd.f32 %v681, -0.33262348
      %v698 = vmul.f32 %v682, %v554
      %v699 = vmul.f32 %v683, %v555
      %v700 = vmul.f32 %v684, %v556
      %v701 = vmul.f32 %v685, %v557
      %v702 = vmul.f32 %v686, %v558
      %v703 = vmul.f32 %v687, %v559
      %v704 = vmul.f32 %v688, %v560
      %v705 = vmul.f32 %v689, %v561
      %v706 = vmul.f32 %v690, %v562
      %v707 = vmul.f32 %v691, %v563
      %v708 = vmul.f32 %v692, %v564
      %v709 = vmul.f32 %v693, %v565
      %v710 = vmul.f32 %v694, %v566
      %v711 = vmul.f32 %v695, %v567
      %v712 = vmul.f32 %v696, %v568
      %v713 = vmul.f32 %v697, %v569
      %v714 = vadd.f32 %v698, 0.99997723
      %v715 = vadd.f32 %v699, 0.99997723
      %v716 = vadd.f32 %v700, 0.99997723
      %v717 = vadd.f32 %v701, 0.99997723
      %v718 = vadd.f32 %v702, 0.99997723
      %v719 = vadd.f32 %v703, 0.99997723
      %v720 = vadd.f32 %v704, 0.99997723
      %v721 = vadd.f32 %v705, 0.99997723
      %v722 = vadd.f32 %v706, 0.99997723
      %v723 = vadd.f32 %v707, 0.99997723
      %v724 = vadd.f32 %v708, 0.99997723
      %v725 = vadd.f32 %v709, 0.99997723
      %v726 = vadd.f32 %v710, 0.99997723
      %v727 = vadd.f32 %v711, 0.99997723
      %v728 = vadd.f32 %v712, 0.99997723
      %v729 = vadd.f32 %v713, 0.99997723
      %v730 = vmul.f32 %v714, %v538
      %v731 = vmul.f32 %v715, %v539
      %v732 = vmul.f32 %v716, %v540
      %v733 = vmul.f32 %v717, %v541
      %v734 = vmul.f32 %v718, %v542
      %v735 = vmul.f32 %v719, %v543
      %v736 = vmul.f32 %v720, %v544
      %v737 = vmul.f32 %v721, %v545
      %v738 = vmul.f32 %v722, %v546
      %v739 = vmul.f32 %v723, %v547
      %v740 = vmul.f32 %v724, %v548
      %v741 = vmul.f32 %v725, %v549
      %v742 = vmul.f32 %v726, %v550
      %v743 = vmul.f32 %v727, %v551
      %v744 = vmul.f32 %v728, %v552
      %v745 = vmul.f32 %v729, %v553
      %vm746 = vcmp.gt.f32.partialorder %v442, %v458
      %vm747 = vcmp.gt.f32.partialorder %v443, %v459
      %vm748 = vcmp.gt.f32.partialorder %v444, %v460
      %vm749 = vcmp.gt.f32.partialorder %v445, %v461
      %vm750 = vcmp.gt.f32.partialorder %v446, %v462
      %vm751 = vcmp.gt.f32.partialorder %v447, %v463
      %vm752 = vcmp.gt.f32.partialorder %v448, %v464
      %vm753 = vcmp.gt.f32.partialorder %v449, %v465
      %vm754 = vcmp.gt.f32.partialorder %v450, %v466
      %vm755 = vcmp.gt.f32.partialorder %v451, %v467
      %vm756 = vcmp.gt.f32.partialorder %v452, %v468
      %vm757 = vcmp.gt.f32.partialorder %v453, %v469
      %vm758 = vcmp.gt.f32.partialorder %v454, %v470
      %vm759 = vcmp.gt.f32.partialorder %v455, %v471
      %vm760 = vcmp.gt.f32.partialorder %v456, %v472
      %vm761 = vcmp.gt.f32.partialorder %v457, %v473
      %v762 = vsub.f32 1.5707964, %v730
      %v763 = vsub.f32 1.5707964, %v731
      %v764 = vsub.f32 1.5707964, %v732
      %v765 = vsub.f32 1.5707964, %v733
      %v766 = vsub.f32 1.5707964, %v734
      %v767 = vsub.f32 1.5707964, %v735
      %v768 = vsub.f32 1.5707964, %v736
      %v769 = vsub.f32 1.5707964, %v737
      %v770 = vsub.f32 1.5707964, %v738
      %v771 = vsub.f32 1.5707964, %v739
      %v772 = vsub.f32 1.5707964, %v740
      %v773 = vsub.f32 1.5707964, %v741
      %v774 = vsub.f32 1.5707964, %v742
      %v775 = vsub.f32 1.5707964, %v743
      %v776 = vsub.f32 1.5707964, %v744
      %v777 = vsub.f32 1.5707964, %v745
      %v778 = vsel %vm746, %v762, %v730
      %v779 = vsel %vm747, %v763, %v731
      %v780 = vsel %vm748, %v764, %v732
      %v781 = vsel %vm749, %v765, %v733
      %v782 = vsel %vm750, %v766, %v734
      %v783 = vsel %vm751, %v767, %v735
      %v784 = vsel %vm752, %v768, %v736
      %v785 = vsel %vm753, %v769, %v737
      %v786 = vsel %vm754, %v770, %v738
      %v787 = vsel %vm755, %v771, %v739
      %v788 = vsel %vm756, %v772, %v740
      %v789 = vsel %vm757, %v773, %v741
      %v790 = vsel %vm758, %v774, %v742
      %v791 = vsel %vm759, %v775, %v743
      %v792 = vsel %vm760, %v776, %v744
      %v793 = vsel %vm761, %v777, %v745
      %vm794 = vcmp.lt.f32.partialorder %v309, 0.0
      %vm795 = vcmp.lt.f32.partialorder %v314, 0.0
      %vm796 = vcmp.lt.f32.partialorder %v319, 0.0
      %vm797 = vcmp.lt.f32.partialorder %v324, 0.0
      %vm798 = vcmp.lt.f32.partialorder %v329, 0.0
      %vm799 = vcmp.lt.f32.partialorder %v334, 0.0
      %vm800 = vcmp.lt.f32.partialorder %v339, 0.0
      %vm801 = vcmp.lt.f32.partialorder %v344, 0.0
      %vm802 = vcmp.lt.f32.partialorder %v349, 0.0
      %vm803 = vcmp.lt.f32.partialorder %v354, 0.0
      %vm804 = vcmp.lt.f32.partialorder %v359, 0.0
      %vm805 = vcmp.lt.f32.partialorder %v364, 0.0
      %vm806 = vcmp.lt.f32.partialorder %v369, 0.0
      %vm807 = vcmp.lt.f32.partialorder %v374, 0.0
      %vm808 = vcmp.lt.f32.partialorder %v379, 0.0
      %vm809 = vcmp.lt.f32.partialorder %v384, 0.0
      %v810 = vsub.f32 3.1415927, %v778
      %v811 = vsub.f32 3.1415927, %v779
      %v812 = vsub.f32 3.1415927, %v780
      %v813 = vsub.f32 3.1415927, %v781
      %v814 = vsub.f32 3.1415927, %v782
      %v815 = vsub.f32 3.1415927, %v783
      %v816 = vsub.f32 3.1415927, %v784
      %v817 = vsub.f32 3.1415927, %v785
      %v818 = vsub.f32 3.1415927, %v786
      %v819 = vsub.f32 3.1415927, %v787
      %v820 = vsub.f32 3.1415927, %v788
      %v821 = vsub.f32 3.1415927, %v789
      %v822 = vsub.f32 3.1415927, %v790
      %v823 = vsub.f32 3.1415927, %v791
      %v824 = vsub.f32 3.1415927, %v792
      %v825 = vsub.f32 3.1415927, %v793
      %v826 = vsel %vm794, %v810, %v778
      %v827 = vsel %vm795, %v811, %v779
      %v828 = vsel %vm796, %v812, %v780
      %v829 = vsel %vm797, %v813, %v781
      %v830 = vsel %vm798, %v814, %v782
      %v831 = vsel %vm799, %v815, %v783
      %v832 = vsel %vm800, %v816, %v784
      %v833 = vsel %vm801, %v817, %v785
      %v834 = vsel %vm802, %v818, %v786
      %v835 = vsel %vm803, %v819, %v787
      %v836 = vsel %vm804, %v820, %v788
      %v837 = vsel %vm805, %v821, %v789
      %v838 = vsel %vm806, %v822, %v790
      %v839 = vsel %vm807, %v823, %v791
      %v840 = vsel %vm808, %v824, %v792
      %v841 = vsel %vm809, %v825, %v793
      %vm842 = vcmp.lt.f32.partialorder %v426, 0.0
      %vm843 = vcmp.lt.f32.partialorder %v427, 0.0
      %vm844 = vcmp.lt.f32.partialorder %v428, 0.0
      %vm845 = vcmp.lt.f32.partialorder %v429, 0.0
      %vm846 = vcmp.lt.f32.partialorder %v430, 0.0
      %vm847 = vcmp.lt.f32.partialorder %v431, 0.0
      %vm848 = vcmp.lt.f32.partialorder %v432, 0.0
      %vm849 = vcmp.lt.f32.partialorder %v433, 0.0
      %vm850 = vcmp.lt.f32.partialorder %v434, 0.0
      %vm851 = vcmp.lt.f32.partialorder %v435, 0.0
      %vm852 = vcmp.lt.f32.partialorder %v436, 0.0
      %vm853 = vcmp.lt.f32.partialorder %v437, 0.0
      %vm854 = vcmp.lt.f32.partialorder %v438, 0.0
      %vm855 = vcmp.lt.f32.partialorder %v439, 0.0
      %vm856 = vcmp.lt.f32.partialorder %v440, 0.0
      %vm857 = vcmp.lt.f32.partialorder %v441, 0.0
      %v858 = vsub.f32 0.0, %v826
      %v859 = vsub.f32 0.0, %v827
      %v860 = vsub.f32 0.0, %v828
      %v861 = vsub.f32 0.0, %v829
      %v862 = vsub.f32 0.0, %v830
      %v863 = vsub.f32 0.0, %v831
      %v864 = vsub.f32 0.0, %v832
      %v865 = vsub.f32 0.0, %v833
      %v866 = vsub.f32 0.0, %v834
      %v867 = vsub.f32 0.0, %v835
      %v868 = vsub.f32 0.0, %v836
      %v869 = vsub.f32 0.0, %v837
      %v870 = vsub.f32 0.0, %v838
      %v871 = vsub.f32 0.0, %v839
      %v872 = vsub.f32 0.0, %v840
      %v873 = vsub.f32 0.0, %v841
      %v874 = vsel %vm842, %v858, %v826
      %v875 = vsel %vm843, %v859, %v827
      %v876 = vsel %vm844, %v860, %v828
      %v877 = vsel %vm845, %v861, %v829
      %v878 = vsel %vm846, %v862, %v830
      %v879 = vsel %vm847, %v863, %v831
      %v880 = vsel %vm848, %v864, %v832
      %v881 = vsel %vm849, %v865, %v833
      %v882 = vsel %vm850, %v866, %v834
      %v883 = vsel %vm851, %v867, %v835
      %v884 = vsel %vm852, %v868, %v836
      %v885 = vsel %vm853, %v869, %v837
      %v886 = vsel %vm854, %v870, %v838
      %v887 = vsel %vm855, %v871, %v839
      %v888 = vsel %vm856, %v872, %v840
      %v889 = vsel %vm857, %v873, %v841
      %v890 = vsub.f32 1.5707964, %v874
      %v891 = vsub.f32 1.5707964, %v875
      %v892 = vsub.f32 1.5707964, %v876
      %v893 = vsub.f32 1.5707964, %v877
      %v894 = vsub.f32 1.5707964, %v878
      %v895 = vsub.f32 1.5707964, %v879
      %v896 = vsub.f32 1.5707964, %v880
      %v897 = vsub.f32 1.5707964, %v881
      %v898 = vsub.f32 1.5707964, %v882
      %v899 = vsub.f32 1.5707964, %v883
      %v900 = vsub.f32 1.5707964, %v884
      %v901 = vsub.f32 1.5707964, %v885
      %v902 = vsub.f32 1.5707964, %v886
      %v903 = vsub.f32 1.5707964, %v887
      %v904 = vsub.f32 1.5707964, %v888
      %v905 = vsub.f32 1.5707964, %v889
      %906 = vst [vmem:[%s208] sm:$0xff] %v890
      %907 = vst [vmem:[%s208 + $0x8] sm:$0xff] %v891
      %908 = vst [vmem:[%s208 + $0x10] sm:$0xff] %v892
      %909 = vst [vmem:[%s208 + $0x18] sm:$0xff] %v893
      %910 = vst [vmem:[%s208 + $0x20] sm:$0xff] %v894
      %911 = vst [vmem:[%s208 + $0x28] sm:$0xff] %v895
      %912 = vst [vmem:[%s208 + $0x30] sm:$0xff] %v896
      %913 = vst [vmem:[%s208 + $0x38] sm:$0xff] %v897
      %914 = vst [vmem:[%s208 + $0x40] sm:$0xff] %v898
      %915 = vst [vmem:[%s208 + $0x48] sm:$0xff] %v899
      %916 = vst [vmem:[%s208 + $0x50] sm:$0xff] %v900
      %917 = vst [vmem:[%s208 + $0x58] sm:$0xff] %v901
      %918 = vst [vmem:[%s208 + $0x60] sm:$0xff] %v902
      %919 = vst [vmem:[%s208 + $0x68] sm:$0xff] %v903
      %920 = vst [vmem:[%s208 + $0x70] sm:$0xff] %v904
      %921 = vst [vmem:[%s208 + $0x78] sm:$0xff] %v905
      %s922 = smul.u32 16, %s19
      %p923 = scmp.lt.s32.totalorder %s18, 1
      %s924 = scalar_select %p923, %s18, 1
      %p925 = scmp.lt.s32.totalorder %s922, 31
      %s926 = scalar_select %p925, %s922, 31
      %s927 = smul.addr %s924, 32
      %s928 = sadd.s32 %s926, %s927
      %s929 = smul.addr %s928, 8
      %s930 = scalar_lea.vmem %s3, %s929
      // Predicated region
      $region33: #{qiconv2d_forward.1} parent=31 // pred_check
        %p931 = pneg %p116
      $region34: #{qiconv2d_forward.1} parent=31 // pred_check_branch
        %933 = sbr.rel (%p931) target = $region36
      $region35: #{qiconv2d_forward.1} parent=31 // pred_region
        %s934 = smul.u32 16, %s19
      $region36: #{qiconv2d_forward.1} parent=31 // pred_fallthru
        _
    $region32: #{qiconv2d_forward.1} parent=5 // pred_fallthru
      _
    %p935 = scmp.le.s32.totalorder 2, %s9
    // Predicated region
    $region37: #{qiconv2d_forward.1} parent=5 // pred_check
      %p936 = pneg %p935
    $region38: #{qiconv2d_forward.1} parent=5 // pred_check_branch
      %938 = sbr.rel (%p936) target = $region40
    $region39: #{qiconv2d_forward.1} parent=5 // pred_region
      %s939 = ssub.s32 %s9, 2
      // Predicated region
      $region41: #{qiconv2d_forward.1} parent=39 // pred_check
        %p940 = pneg %p122
      $region42: #{qiconv2d_forward.1} parent=39 // pred_check_branch
        %942 = sbr.rel (%p940) target = $region44
      $region43: #{qiconv2d_forward.1} parent=39 // pred_region
        %s943 = smul.u32 16, %s21
        %p944 = scmp.lt.s32.totalorder %s20, 1
        %s945 = scalar_select %p944, %s20, 1
        %p946 = scmp.lt.s32.totalorder %s943, 31
        %s947 = scalar_select %p946, %s943, 31
        %s948 = smul.addr %s945, 32
        %s949 = sadd.s32 %s947, %s948
        %s950 = smul.addr %s949, 8
        %s951 = scalar_lea.vmem %s3, %s950
      $region44: #{qiconv2d_forward.1} parent=39 // pred_fallthru
        _
    $region40: #{qiconv2d_forward.1} parent=5 // pred_fallthru
      _
  $region6: #{qiconv2d_forward.1} parent=0 // loop_footer
    %s13 = sadd.s32 1, %s9
  $region7: #{qiconv2d_forward.1} parent=0 // loop_footer_branch
    %8 = sbr.rel target = $region3
  $region8: #{qiconv2d_forward.1} parent=0 // loop_exit
    _

</llo_original>
